<compile_context>
chip_gen: v7x
topology: tpu7x:2x2x1
jax: 0.10.0
libtpu: 0.0.40
codegen_flags: <defaults>
</compile_context>

<pallas_src>
from itertools import permutations

import jax
import jax.numpy as jnp
from jax.experimental import pallas as pl
from jax.experimental.pallas import tpu as pltpu

_LANE = 128
_MAX_ROWS_PER_TILE = 1024   # 1024 rows x 128 lanes per source per tile (f32)
_CHUNK_ROWS = 16            # rows per inner-loop step (two f32 vregs / operand)


def _cdiv(a, b):
    return -(-a // b)


def _round_up(a, b):
    return _cdiv(a, b) * b


def _min_over_perms(diffs, num_sources):
    """min over all source permutations p of sum_i diffs[i][p[i]], sharing
    permutation-prefix partial sums."""
    best = [None]

    def rec(level, used, partial):
        if level == num_sources:
            best[0] = partial if best[0] is None else jnp.minimum(best[0], partial)
            return
        for j in range(num_sources):
            if used & (1 << j):
                continue
            nxt = diffs[level][j] if partial is None else partial + diffs[level][j]
            rec(level + 1, used | (1 << j), nxt)

    rec(0, 0, None)
    return best[0]


def _make_pit_kernel(num_sources, rows_tile, chunk_rows):
    n_chunks = rows_tile // chunk_rows

    def kernel(est_ref, tgt_ref, out_ref, acc_ref):
        # est_ref / tgt_ref : (S, rows_tile, 128) VMEM tiles (batch dim squeezed)
        # acc_ref           : (chunk_rows, 128) f32 scratch accumulator
        acc_ref[...] = jnp.zeros_like(acc_ref)

        @pl.loop(0, n_chunks)
        def _(c):
            r0 = pl.multiple_of(c * chunk_rows, chunk_rows)
            est = [est_ref[s, pl.ds(r0, chunk_rows), :].astype(jnp.float32)
                   for s in range(num_sources)]
            tgt = [tgt_ref[s, pl.ds(r0, chunk_rows), :].astype(jnp.float32)
                   for s in range(num_sources)]
            # Hoisted pairwise L1 diffs: S^2 unique terms instead of S * S!.
            diffs = [[jnp.abs(est[i] - tgt[j]) for j in range(num_sources)]
                     for i in range(num_sources)]
            acc_ref[...] += _min_over_perms(diffs, num_sources)

        # Sublane (XLU) reduce -> (1, 128) per-tile partial sum.
        out_ref[...] = jnp.sum(acc_ref[...], axis=0,
                               keepdims=True).reshape(1, 1, 1, _LANE)

    return kernel


def permutation_invariant_loss(estimates, targets):
    """Pallas-backed PIT loss with elementwise L1 base loss."""
    num_batch = estimates.shape[0]
    num_sources = estimates.shape[-1]

    est = estimates.reshape(num_batch, -1, num_sources)   # (B, T, S)
    tgt = targets.reshape(num_batch, -1, num_sources)
    t_true = est.shape[1]

    # --- tiling: minimal padding; >= 2 grid steps when possible (v7x 2 TCs) ---
    rows = _cdiv(t_true, _LANE)
    n_t = _cdiv(rows, _MAX_ROWS_PER_TILE)
    if num_batch * n_t < 2 and rows > _CHUNK_ROWS:
        n_t = 2
    rows_tile = _round_up(_cdiv(rows, n_t), _CHUNK_ROWS)
    rows_pad = n_t * rows_tile
    t_pad = rows_pad * _LANE

    # --- source-major layout + minimal zero pad (fuses with the transpose copy)
    # TODO(synk): produce (B, S, T) upstream to remove this HBM round-trip.
    est = jnp.transpose(est, (0, 2, 1))                    # (B, S, T)
    tgt = jnp.transpose(tgt, (0, 2, 1))
    if t_pad != t_true:
        pad = ((0, 0), (0, 0), (0, t_pad - t_true))
        est = jnp.pad(est, pad)   # zeros in BOTH inputs -> 0 loss contribution
        tgt = jnp.pad(tgt, pad)
    est = est.reshape(num_batch, num_sources, rows_pad, _LANE)
    tgt = tgt.reshape(num_batch, num_sources, rows_pad, _LANE)

    # Explicit VMEM budget: 2 inputs x 2 pipeline buffers x one tile + headroom,
    # >= 32 MiB (v5e default scoped limit is 16 MiB), <= 64 MiB (v7x physical).
    tile_bytes = num_sources * rows_tile * _LANE * est.dtype.itemsize
    vmem_limit = int(min(64 * 1024 * 1024,
                         max(32 * 1024 * 1024,
                             4 * tile_bytes + 8 * 1024 * 1024)))

    kernel = _make_pit_kernel(num_sources, rows_tile, _CHUNK_ROWS)

    partials = pl.pallas_call(
        kernel,
        out_shape=jax.ShapeDtypeStruct((num_batch, n_t, 1, _LANE), jnp.float32),
        grid=(num_batch, n_t),
        in_specs=[
            pl.BlockSpec((None, num_sources, rows_tile, _LANE),
                         lambda b, t: (b, 0, t, 0)),
            pl.BlockSpec((None, num_sources, rows_tile, _LANE),
                         lambda b, t: (b, 0, t, 0)),
        ],
        out_specs=pl.BlockSpec((1, 1, 1, _LANE), lambda b, t: (b, t, 0, 0)),
        scratch_shapes=[pltpu.VMEM((_CHUNK_ROWS, _LANE), jnp.float32)],
        compiler_params=pltpu.CompilerParams(
            dimension_semantics=("parallel", "parallel"),
            vmem_limit_bytes=vmem_limit),
    )(est, tgt)

    # Fold the 1/S source-mean and the global (B, T) mean into one divide.
    denom = float(num_batch * t_true * num_sources)
    return jnp.sum(partials) / denom


def _reference_pit_loss(estimates, targets):
    """Pure-JAX reference mirroring the PyTorch forward exactly."""
    num_batch = estimates.shape[0]
    num_sources = estimates.shape[-1]
    est = estimates.reshape(num_batch, -1, num_sources)
    tgt = targets.reshape(num_batch, -1, num_sources)
    losses = []
    for p in permutations(range(num_sources)):
        _tgt = tgt[..., list(p)]
        loss = jnp.abs(est - _tgt)          # L1, reduction='none'
        loss = loss.mean(axis=-1)           # mean over sources
        losses.append(loss)
    losses = jnp.stack(losses, axis=-1)     # (B, T, P)
    losses = jnp.min(losses, axis=-1)       # (B, T)
    return jnp.mean(losses)


if __name__ == "__main__":
    # estimates / targets: (batch, time, freq, num_sources)
    # T*F = 144 is deliberately NOT a multiple of 128 to exercise padding.
    B, T, F, S = 2, 16, 9, 3
    key = jax.random.PRNGKey(0)
    k1, k2 = jax.random.split(key)
    estimates = jax.random.normal(k1, (B, T, F, S), dtype=jnp.float32)
    targets = jax.random.normal(k2, (B, T, F, S), dtype=jnp.float32)

    loss_fn = jax.jit(permutation_invariant_loss)
    loss = jax.block_until_ready(loss_fn(estimates, targets))

    ref = _reference_pit_loss(estimates, targets)
    assert jnp.allclose(loss, ref, rtol=1e-5, atol=1e-5), (loss, ref)

    print("KERNEL_OK")
</pallas_src>

<mosaic_0001>
module attributes {stable_mosaic.version = 11 : i64} {
  func.func @kernel(%arg0: i32, %arg1: i32, %arg2: memref<1x3x16x128xf32, #tpu.memory_space<vmem>>, %arg3: memref<1x3x16x128xf32, #tpu.memory_space<vmem>>, %arg4: memref<1x1x1x128xf32, #tpu.memory_space<vmem>>, %arg5: memref<16x128xf32, #tpu.memory_space<vmem>>) attributes {dimension_semantics = [#tpu.dimension_semantics<parallel>, #tpu.dimension_semantics<parallel>], iteration_bounds = array<i64: 2, 1>, scalar_prefetch = 0 : i64, scratch_operands = 1 : i64, tpu.core_type = #tpu.core_type<tc>, window_params = [{transform_indices = @transform_0, window_bounds = array<i64: 1, 3, 16, 128>}, {transform_indices = @transform_1, window_bounds = array<i64: 1, 3, 16, 128>}, {transform_indices = @transform_2, window_bounds = array<i64: 1, 1, 1, 128>}]} {
    %cst = arith.constant 0.000000e+00 : f32
    %0 = vector.broadcast %cst : f32 to vector<16x128xf32>
    %c0 = arith.constant 0 : index
    %c0_0 = arith.constant 0 : index
    %1 = vector.load %arg5[%c0, %c0_0] : memref<16x128xf32, #tpu.memory_space<vmem>>, vector<16x128xf32>
    tpu.vector_store %arg5[%c0, %c0_0], %0 {strides = array<i32>} : memref<16x128xf32, #tpu.memory_space<vmem>>, vector<16x128xf32>,
    %c0_i32 = arith.constant 0 : i32
    %c1_i32 = arith.constant 1 : i32
    %2 = arith.muli %c0_i32, %c1_i32 : i32
    %c0_i32_1 = arith.constant 0 : i32
    %3 = arith.addi %c0_i32_1, %2 : i32
    %c16_i32 = arith.constant 16 : i32
    %4 = arith.muli %3, %c16_i32 : i32
    %5 = tpu.assume_multiple %4, 16 : i32
    %c0_2 = arith.constant 0 : index
    %c0_3 = arith.constant 0 : index
    %6 = arith.index_cast %5 : i32 to index
    %c0_4 = arith.constant 0 : index
    %7 = vector.load %arg2[%c0_2, %c0_3, %6, %c0_4] : memref<1x3x16x128xf32, #tpu.memory_space<vmem>>, vector<1x1x16x128xf32>
    %8 = vector.shape_cast %7 : vector<1x1x16x128xf32> to vector<16x128xf32>
    %c0_5 = arith.constant 0 : index
    %c1 = arith.constant 1 : index
    %9 = arith.index_cast %5 : i32 to index
    %c0_6 = arith.constant 0 : index
    %10 = vector.load %arg2[%c0_5, %c1, %9, %c0_6] : memref<1x3x16x128xf32, #tpu.memory_space<vmem>>, vector<1x1x16x128xf32>
    %11 = vector.shape_cast %10 : vector<1x1x16x128xf32> to vector<16x128xf32>
    %c0_7 = arith.constant 0 : index
    %c2 = arith.constant 2 : index
    %12 = arith.index_cast %5 : i32 to index
    %c0_8 = arith.constant 0 : index
    %13 = vector.load %arg2[%c0_7, %c2, %12, %c0_8] : memref<1x3x16x128xf32, #tpu.memory_space<vmem>>, vector<1x1x16x128xf32>
    %14 = vector.shape_cast %13 : vector<1x1x16x128xf32> to vector<16x128xf32>
    %c0_9 = arith.constant 0 : index
    %c0_10 = arith.constant 0 : index
    %15 = arith.index_cast %5 : i32 to index
    %c0_11 = arith.constant 0 : index
    %16 = vector.load %arg3[%c0_9, %c0_10, %15, %c0_11] : memref<1x3x16x128xf32, #tpu.memory_space<vmem>>, vector<1x1x16x128xf32>
    %17 = vector.shape_cast %16 : vector<1x1x16x128xf32> to vector<16x128xf32>
    %c0_12 = arith.constant 0 : index
    %c1_13 = arith.constant 1 : index
    %18 = arith.index_cast %5 : i32 to index
    %c0_14 = arith.constant 0 : index
    %19 = vector.load %arg3[%c0_12, %c1_13, %18, %c0_14] : memref<1x3x16x128xf32, #tpu.memory_space<vmem>>, vector<1x1x16x128xf32>
    %20 = vector.shape_cast %19 : vector<1x1x16x128xf32> to vector<16x128xf32>
    %c0_15 = arith.constant 0 : index
    %c2_16 = arith.constant 2 : index
    %21 = arith.index_cast %5 : i32 to index
    %c0_17 = arith.constant 0 : index
    %22 = vector.load %arg3[%c0_15, %c2_16, %21, %c0_17] : memref<1x3x16x128xf32, #tpu.memory_space<vmem>>, vector<1x1x16x128xf32>
    %23 = vector.shape_cast %22 : vector<1x1x16x128xf32> to vector<16x128xf32>
    %24 = arith.subf %8, %17 : vector<16x128xf32>
    %25 = math.absf %24 : vector<16x128xf32>
    %26 = arith.subf %8, %20 : vector<16x128xf32>
    %27 = math.absf %26 : vector<16x128xf32>
    %28 = arith.subf %8, %23 : vector<16x128xf32>
    %29 = math.absf %28 : vector<16x128xf32>
    %30 = arith.subf %11, %17 : vector<16x128xf32>
    %31 = math.absf %30 : vector<16x128xf32>
    %32 = arith.subf %11, %20 : vector<16x128xf32>
    %33 = math.absf %32 : vector<16x128xf32>
    %34 = arith.subf %11, %23 : vector<16x128xf32>
    %35 = math.absf %34 : vector<16x128xf32>
    %36 = arith.subf %14, %17 : vector<16x128xf32>
    %37 = math.absf %36 : vector<16x128xf32>
    %38 = arith.subf %14, %20 : vector<16x128xf32>
    %39 = math.absf %38 : vector<16x128xf32>
    %40 = arith.subf %14, %23 : vector<16x128xf32>
    %41 = math.absf %40 : vector<16x128xf32>
    %c0_18 = arith.constant 0 : index
    %c0_19 = arith.constant 0 : index
    %42 = vector.load %arg5[%c0_18, %c0_19] : memref<16x128xf32, #tpu.memory_space<vmem>>, vector<16x128xf32>
    %43 = arith.addf %25, %33 : vector<16x128xf32>
    %44 = arith.addf %43, %41 : vector<16x128xf32>
    %45 = arith.addf %25, %35 : vector<16x128xf32>
    %46 = arith.addf %45, %39 : vector<16x128xf32>
    %47 = arith.minimumf %44, %46 : vector<16x128xf32>
    %48 = arith.addf %27, %31 : vector<16x128xf32>
    %49 = arith.addf %48, %41 : vector<16x128xf32>
    %50 = arith.minimumf %47, %49 : vector<16x128xf32>
    %51 = arith.addf %27, %35 : vector<16x128xf32>
    %52 = arith.addf %51, %37 : vector<16x128xf32>
    %53 = arith.minimumf %50, %52 : vector<16x128xf32>
    %54 = arith.addf %29, %31 : vector<16x128xf32>
    %55 = arith.addf %54, %39 : vector<16x128xf32>
    %56 = arith.minimumf %53, %55 : vector<16x128xf32>
    %57 = arith.addf %29, %33 : vector<16x128xf32>
    %58 = arith.addf %57, %37 : vector<16x128xf32>
    %59 = arith.minimumf %56, %58 : vector<16x128xf32>
    %60 = arith.addf %42, %59 : vector<16x128xf32>
    %c0_20 = arith.constant 0 : index
    %c0_21 = arith.constant 0 : index
    %61 = vector.load %arg5[%c0_20, %c0_21] : memref<16x128xf32, #tpu.memory_space<vmem>>, vector<16x128xf32>
    tpu.vector_store %arg5[%c0_20, %c0_21], %60 {strides = array<i32>} : memref<16x128xf32, #tpu.memory_space<vmem>>, vector<16x128xf32>,
    %c1_i32_22 = arith.constant 1 : i32
    %c0_23 = arith.constant 0 : index
    %c0_24 = arith.constant 0 : index
    %62 = vector.load %arg5[%c0_23, %c0_24] : memref<16x128xf32, #tpu.memory_space<vmem>>, vector<16x128xf32>
    %cst_25 = arith.constant dense<0.000000e+00> : vector<128xf32>
    %63 = vector.multi_reduction <add>, %62, %cst_25 [0] : vector<16x128xf32> to vector<128xf32>
    %64 = vector.shape_cast %63 : vector<128xf32> to vector<1x128xf32>
    %65 = vector.shape_cast %64 : vector<1x128xf32> to vector<1x1x1x128xf32>
    %c0_26 = arith.constant 0 : index
    %c0_27 = arith.constant 0 : index
    %c0_28 = arith.constant 0 : index
    %c0_29 = arith.constant 0 : index
    %66 = vector.load %arg4[%c0_26, %c0_27, %c0_28, %c0_29] : memref<1x1x1x128xf32, #tpu.memory_space<vmem>>, vector<1x1x1x128xf32>
    tpu.vector_store %arg4[%c0_26, %c0_27, %c0_28, %c0_29], %65 {strides = array<i32>} : memref<1x1x1x128xf32, #tpu.memory_space<vmem>>, vector<1x1x1x128xf32>,
    return
  }
  func.func @transform_0(%arg0: i32, %arg1: i32) -> (i32, i32, i32, i32) {
    %c0_i32 = arith.constant 0 : i32
    %c0_i32_0 = arith.constant 0 : i32
    %c0_i32_1 = arith.constant 0 : i32
    return %arg0, %c0_i32, %arg1, %c0_i32_0 : i32, i32, i32, i32
  }
  func.func @transform_1(%arg0: i32, %arg1: i32) -> (i32, i32, i32, i32) {
    %c0_i32 = arith.constant 0 : i32
    %c0_i32_0 = arith.constant 0 : i32
    %c0_i32_1 = arith.constant 0 : i32
    return %arg0, %c0_i32, %arg1, %c0_i32_0 : i32, i32, i32, i32
  }
  func.func @transform_2(%arg0: i32, %arg1: i32) -> (i32, i32, i32, i32) {
    %c0_i32 = arith.constant 0 : i32
    %c0_i32_0 = arith.constant 0 : i32
    %c0_i32_1 = arith.constant 0 : i32
    return %arg0, %arg1, %c0_i32, %c0_i32_0 : i32, i32, i32, i32
  }
}

</mosaic_0001>

<llo_original>
// kernel: permutation_invariant_loss.1
$region0: #{permutation_invariant_loss.1}
  #allocation0 [shape = 'u32[]', space=smem, size = 0x4, offset = 0x4, fixed_abs, tag = 'smem constant byte address 0x4 - core index']
  #allocation1 [shape = 'u32[144,128]{1,0:T(1,128)}', space=vmem, size = 0x12000, scoped, tag = 'internal scratch']
  #allocation2 [shape = 'f32[16,128]{1,0:T(8,128)}', space=vmem, size = 0x2000, scoped, tag = 'scratch operand']
  %s0 = inlined_call_operand.vmem [shape: f32[2,3,16,128], index: 0, kind: input, shape index: {}]
  %s1 = inlined_call_operand.vmem [shape: f32[2,3,16,128], index: 1, kind: input, shape index: {}]
  %s2 = inlined_call_operand.vmem [shape: f32[2,1,1,128], index: 2, kind: output, shape index: {}]
  %s3 = sld [smem:[#allocation0]]
  $region41: #{permutation_invariant_loss.1} parent=0
    _
  %s5 = ssub.s32 1, %s3
  %s6 = scalar_select 0, %s5, %s3
  loop: start=0, step=1, limit=4
  $region2: #{permutation_invariant_loss.1} parent=0 // loop_pre_header
    _
  $region3: #{permutation_invariant_loss.1} parent=0 // loop_header
    %s8 = sphi 0, %s12
    %p9 = scmp.ge.s32.totalorder %s8, 4
    %s15 = sphi 0, %s27
    %s16 = sphi 0, %s23
    %s17 = sphi 0, %s15
    %s18 = sphi 0, %s16
    %s19 = sphi 0, %s17
    %s20 = sphi 0, %s18
    %s32 = sphi 0, %s34
    %s35 = sphi 0, %s32
    %s36 = sphi 0, %s35
    %s52 = sphi 0, %s36
    %s60 = sphi 0, %s62
    %s63 = sphi 0, %s60
    %s64 = sphi 0, %s63
    %s80 = sphi 0, %s64
    %s88 = sphi 0, %s90
    %s91 = sphi 0, %s88
    %s92 = sphi 0, %s91
    %s108 = sphi 0, %s92
  $region4: #{permutation_invariant_loss.1} parent=0 // loop_header_branch
    %11 = sbr.rel (%p9) target = $region8
  $region5: #{permutation_invariant_loss.1} parent=0 // loop_body
    %s13 = ssub.s32 %s8, 1
    %s14 = ssub.s32 %s8, 2
    %s21 = sadd.s32 1, %s16
    %p22 = scmp.ge.s32.totalorder %s21, 1
    %s23 = scalar_select %p22, 0, %s21
    %s24 = sadd.s32 1, %s15
    %s25 = scalar_select %p22, %s24, %s15
    %p26 = scmp.ge.s32.totalorder %s25, 2
    %s27 = scalar_select %p26, 0, %s25
    %s28 = ssub.s32 %s15, %s27
    %s29 = ssub.s32 %s16, %s23
    %s30 = sor.u32 %s28, %s29
    %p31 = scmp.eq.s32.totalorder %s30, 0
    %s33 = sadd.s32 %s32, 1
    %s34 = scalar_select %p31, %s32, %s33
    %p37 = pneg %p31
    %p38 = scmp.eq.s32.totalorder %s8, 1
    %p39 = por %p37, %p38
    %p40 = scmp.ne.s32.totalorder %s32, %s35
    %p41 = scmp.eq.s32.totalorder %s8, 0
    %p42 = por %p40, %p41
    %p43 = scmp.ne.s32.totalorder %s32, %s35
    %p44 = scmp.eq.s32.totalorder %s13, 1
    %p45 = por %p43, %p44
    %p46 = scmp.ne.s32.totalorder %s35, %s36
    %p47 = scmp.eq.s32.totalorder %s13, 0
    %p48 = por %p46, %p47
    %p49 = scmp.ne.s32.totalorder %s35, %s36
    %p50 = scmp.eq.s32.totalorder %s14, 1
    %p51 = por %p49, %p50
    %p53 = scmp.ne.s32.totalorder %s36, %s52
    %p54 = scmp.eq.s32.totalorder %s14, 0
    %p55 = por %p53, %p54
    %s56 = ssub.s32 %s15, %s27
    %s57 = ssub.s32 %s16, %s23
    %s58 = sor.u32 %s56, %s57
    %p59 = scmp.eq.s32.totalorder %s58, 0
    %s61 = sadd.s32 %s60, 1
    %s62 = scalar_select %p59, %s60, %s61
    %p65 = pneg %p59
    %p66 = scmp.eq.s32.totalorder %s8, 1
    %p67 = por %p65, %p66
    %p68 = scmp.ne.s32.totalorder %s60, %s63
    %p69 = scmp.eq.s32.totalorder %s8, 0
    %p70 = por %p68, %p69
    %p71 = scmp.ne.s32.totalorder %s60, %s63
    %p72 = scmp.eq.s32.totalorder %s13, 1
    %p73 = por %p71, %p72
    %p74 = scmp.ne.s32.totalorder %s63, %s64
    %p75 = scmp.eq.s32.totalorder %s13, 0
    %p76 = por %p74, %p75
    %p77 = scmp.ne.s32.totalorder %s63, %s64
    %p78 = scmp.eq.s32.totalorder %s14, 1
    %p79 = por %p77, %p78
    %p81 = scmp.ne.s32.totalorder %s64, %s80
    %p82 = scmp.eq.s32.totalorder %s14, 0
    %p83 = por %p81, %p82
    %s84 = ssub.s32 %s15, %s27
    %s85 = ssub.s32 %s16, %s23
    %s86 = sor.u32 %s84, %s85
    %p87 = scmp.eq.s32.totalorder %s86, 0
    %s89 = sadd.s32 %s88, 1
    %s90 = scalar_select %p87, %s88, %s89
    %p93 = pneg %p87
    %p94 = scmp.eq.s32.totalorder %s8, 1
    %p95 = por %p93, %p94
    %p96 = scmp.ne.s32.totalorder %s88, %s91
    %p97 = scmp.eq.s32.totalorder %s8, 0
    %p98 = por %p96, %p97
    %p99 = scmp.ne.s32.totalorder %s88, %s91
    %p100 = scmp.eq.s32.totalorder %s13, 1
    %p101 = por %p99, %p100
    %p102 = scmp.ne.s32.totalorder %s91, %s92
    %p103 = scmp.eq.s32.totalorder %s13, 0
    %p104 = por %p102, %p103
    %p105 = scmp.ne.s32.totalorder %s91, %s92
    %p106 = scmp.eq.s32.totalorder %s14, 1
    %p107 = por %p105, %p106
    %p109 = scmp.ne.s32.totalorder %s92, %s108
    %p110 = scmp.eq.s32.totalorder %s14, 0
    %p111 = por %p109, %p110
    %p112 = scmp.le.s32.totalorder 1, %s8
    %p113 = scmp.lt.s32.totalorder %s8, 3
    %p114 = pnand %p112, %p113
    %p115 = pneg %p114
    // Predicated region
    $region9: #{permutation_invariant_loss.1} parent=5 // pred_check
      _
    $region10: #{permutation_invariant_loss.1} parent=5 // pred_check_branch
      %117 = sbr.rel (%p114) target = $region12
    $region11: #{permutation_invariant_loss.1} parent=5 // pred_region
      %s118 = ssub.s32 %s8, 1
    $region12: #{permutation_invariant_loss.1} parent=5 // pred_fallthru
      _
    %p119 = scmp.lt.s32.totalorder %s8, 2
    // Predicated region
    $region13: #{permutation_invariant_loss.1} parent=5 // pred_check
      %p120 = pneg %p119
    $region14: #{permutation_invariant_loss.1} parent=5 // pred_check_branch
      %122 = sbr.rel (%p120) target = $region16
    $region15: #{permutation_invariant_loss.1} parent=5 // pred_region
      // Predicated region
      $region17: #{permutation_invariant_loss.1} parent=15 // pred_check
        %p123 = pneg %p42
      $region18: #{permutation_invariant_loss.1} parent=15 // pred_check_branch
        %125 = sbr.rel (%p123) target = $region20
      $region19: #{permutation_invariant_loss.1} parent=15 // pred_region
        %s126 = smul.u32 2, %s16
        %p127 = scmp.lt.s32.totalorder %s15, 1
        %s128 = scalar_select %p127, %s15, 1
        %p129 = scmp.lt.s32.totalorder %s126, 1
        %s130 = scalar_select %p129, %s126, 1
        %s131 = smul.addr %s128, 6
        %s132 = sadd.s32 %s130, %s131
        %s133 = smul.addr %s132, 8
        %s134 = scalar_lea.vmem %s0, %s133
        %s135 = smul.u32 2, %s16
      $region20: #{permutation_invariant_loss.1} parent=15 // pred_fallthru
        _
      // Predicated region
      $region21: #{permutation_invariant_loss.1} parent=15 // pred_check
        %p136 = pneg %p70
      $region22: #{permutation_invariant_loss.1} parent=15 // pred_check_branch
        %138 = sbr.rel (%p136) target = $region24
      $region23: #{permutation_invariant_loss.1} parent=15 // pred_region
        %s139 = smul.u32 2, %s16
        %p140 = scmp.lt.s32.totalorder %s15, 1
        %s141 = scalar_select %p140, %s15, 1
        %p142 = scmp.lt.s32.totalorder %s139, 1
        %s143 = scalar_select %p142, %s139, 1
        %s144 = smul.addr %s141, 6
        %s145 = sadd.s32 %s143, %s144
        %s146 = smul.addr %s145, 8
        %s147 = scalar_lea.vmem %s1, %s146
        %s148 = smul.u32 2, %s16
      $region24: #{permutation_invariant_loss.1} parent=15 // pred_fallthru
        _
    $region16: #{permutation_invariant_loss.1} parent=5 // pred_fallthru
      _
    %p149 = scmp.le.s32.totalorder 1, %s8
    %p150 = scmp.lt.s32.totalorder %s8, 3
    %p151 = pnand %p149, %p150
    %p152 = pneg %p151
    // Predicated region
    $region25: #{permutation_invariant_loss.1} parent=5 // pred_check
      _
    $region26: #{permutation_invariant_loss.1} parent=5 // pred_check_branch
      %154 = sbr.rel (%p151) target = $region28
    $region27: #{permutation_invariant_loss.1} parent=5 // pred_region
      %s155 = ssub.s32 %s8, 1
      %s156 = smul.u32 2, %s18
      %p157 = scmp.lt.s32.totalorder %s17, 1
      %s158 = scalar_select %p157, %s17, 1
      %p159 = scmp.lt.s32.totalorder %s156, 1
      %s160 = scalar_select %p159, %s156, 1
      %s161 = smul.addr %s158, 6
      %s162 = sadd.s32 %s160, %s161
      %s163 = smul.addr %s162, 8
      %s164 = scalar_lea.vmem %s0, %s163
      %p165 = pneg %p48
      %p166 = pneg %p45
      %s167 = smul.u32 2, %s18
      %p168 = scmp.lt.s32.totalorder %s17, 1
      %s169 = scalar_select %p168, %s17, 1
      %p170 = scmp.lt.s32.totalorder %s167, 1
      %s171 = scalar_select %p170, %s167, 1
      %s172 = smul.addr %s169, 6
      %s173 = sadd.s32 %s171, %s172
      %s174 = smul.addr %s173, 8
      %s175 = scalar_lea.vmem %s1, %s174
      %p176 = pneg %p76
      %p177 = pneg %p73
      %p178 = pneg %p104
      %p179 = pneg %p101
      %p180 = scmp.lt.s32.totalorder %s17, 1
      %s181 = scalar_select %p180, %s17, 1
      %p182 = scmp.lt.s32.totalorder %s18, 0
      %s183 = scalar_select %p182, %s18, 0
      %s184 = sadd.s32 %s183, %s181
      %s185 = scalar_lea.vmem %s2, %s184
      %s186 = smul.u32 2, %s18
      %p187 = scmp.lt.s32.totalorder %s17, 1
      %s188 = scalar_select %p187, %s17, 1
      %p189 = scmp.lt.s32.totalorder %s186, 1
      %s190 = scalar_select %p189, %s186, 1
      %s191 = smul.addr %s188, 6
      %s192 = sadd.s32 %s190, %s191
      %s193 = smul.addr %s192, 8
      %s194 = scalar_lea.vmem %s0, %s193
      %s195 = smul.u32 2, %s18
      %s196 = smul.u32 2, %s18
      %p197 = scmp.lt.s32.totalorder %s17, 1
      %s198 = scalar_select %p197, %s17, 1
      %p199 = scmp.lt.s32.totalorder %s196, 1
      %s200 = scalar_select %p199, %s196, 1
      %s201 = smul.addr %s198, 6
      %s202 = sadd.s32 %s200, %s201
      %s203 = smul.addr %s202, 8
      %s204 = scalar_lea.vmem %s1, %s203
      %s205 = smul.u32 2, %s18
      %p206 = scmp.lt.s32.totalorder %s17, 1
      %s207 = scalar_select %p206, %s17, 1
      %p208 = scmp.lt.s32.totalorder %s18, 0
      %s209 = scalar_select %p208, %s18, 0
      %s210 = sadd.s32 %s209, %s207
      %s211 = scalar_lea.vmem %s2, %s210
      %212 = vst [vmem:[#allocation2] sm:$0xff] 0.0
      %213 = vst [vmem:[#allocation2 + $0x8] sm:$0xff] 0.0
      %v214 = vld [vmem:[%s194] sm:$0xff]
      %v215 = vld [vmem:[%s194 + $0x8] sm:$0xff]
      %s216 = sadd.s32 0, 16
      %s217 = scalar_lea.vmem %s194, %s216
      %v218 = vld [vmem:[%s217] sm:$0xff]
      %v219 = vld [vmem:[%s217 + $0x8] sm:$0xff]
      %s220 = sadd.s32 0, 32
      %s221 = scalar_lea.vmem %s194, %s220
      %v222 = vld [vmem:[%s221] sm:$0xff]
      %v223 = vld [vmem:[%s221 + $0x8] sm:$0xff]
      %v224 = vld [vmem:[%s204] sm:$0xff]
      %v225 = vld [vmem:[%s204 + $0x8] sm:$0xff]
      %s226 = scalar_lea.vmem %s204, %s216
      %v227 = vld [vmem:[%s226] sm:$0xff]
      %v228 = vld [vmem:[%s226 + $0x8] sm:$0xff]
      %s229 = scalar_lea.vmem %s204, %s220
      %v230 = vld [vmem:[%s229] sm:$0xff]
      %v231 = vld [vmem:[%s229 + $0x8] sm:$0xff]
      %v232 = vsub.f32 %v214, %v224
      %v233 = vsub.f32 %v215, %v225
      %v234 = vand.u32 2147483647, %v232
      %v235 = vand.u32 2147483647, %v233
      %v236 = vsub.f32 %v214, %v227
      %v237 = vsub.f32 %v215, %v228
      %v238 = vand.u32 2147483647, %v236
      %v239 = vand.u32 2147483647, %v237
      %v240 = vsub.f32 %v214, %v230
      %v241 = vsub.f32 %v215, %v231
      %v242 = vand.u32 2147483647, %v240
      %v243 = vand.u32 2147483647, %v241
      %v244 = vsub.f32 %v218, %v224
      %v245 = vsub.f32 %v219, %v225
      %v246 = vand.u32 2147483647, %v244
      %v247 = vand.u32 2147483647, %v245
      %v248 = vsub.f32 %v218, %v227
      %v249 = vsub.f32 %v219, %v228
      %v250 = vand.u32 2147483647, %v248
      %v251 = vand.u32 2147483647, %v249
      %v252 = vsub.f32 %v218, %v230
      %v253 = vsub.f32 %v219, %v231
      %v254 = vand.u32 2147483647, %v252
      %v255 = vand.u32 2147483647, %v253
      %v256 = vsub.f32 %v222, %v224
      %v257 = vsub.f32 %v223, %v225
      %v258 = vand.u32 2147483647, %v256
      %v259 = vand.u32 2147483647, %v257
      %v260 = vsub.f32 %v222, %v227
      %v261 = vsub.f32 %v223, %v228
      %v262 = vand.u32 2147483647, %v260
      %v263 = vand.u32 2147483647, %v261
      %v264 = vsub.f32 %v222, %v230
      %v265 = vsub.f32 %v223, %v231
      %v266 = vand.u32 2147483647, %v264
      %v267 = vand.u32 2147483647, %v265
      %v268 = vld [vmem:[#allocation2] sm:$0xff]
      %v269 = vld [vmem:[#allocation2 + $0x8] sm:$0xff]
      %v270 = vadd.f32 %v234, %v250
      %v271 = vadd.f32 %v235, %v251
      %v272 = vadd.f32 %v270, %v266
      %v273 = vadd.f32 %v271, %v267
      %v274 = vadd.f32 %v234, %v254
      %v275 = vadd.f32 %v235, %v255
      %v276 = vadd.f32 %v274, %v262
      %v277 = vadd.f32 %v275, %v263
      %v278 = vmin.f32 %v272, %v276
      %v279 = vmin.f32 %v273, %v277
      %v280 = vadd.f32 %v238, %v246
      %v281 = vadd.f32 %v239, %v247
      %v282 = vadd.f32 %v280, %v266
      %v283 = vadd.f32 %v281, %v267
      %v284 = vmin.f32 %v278, %v282
      %v285 = vmin.f32 %v279, %v283
      %v286 = vadd.f32 %v238, %v254
      %v287 = vadd.f32 %v239, %v255
      %v288 = vadd.f32 %v286, %v258
      %v289 = vadd.f32 %v287, %v259
      %v290 = vmin.f32 %v284, %v288
      %v291 = vmin.f32 %v285, %v289
      %v292 = vadd.f32 %v242, %v246
      %v293 = vadd.f32 %v243, %v247
      %v294 = vadd.f32 %v292, %v262
      %v295 = vadd.f32 %v293, %v263
      %v296 = vmin.f32 %v290, %v294
      %v297 = vmin.f32 %v291, %v295
      %v298 = vadd.f32 %v242, %v250
      %v299 = vadd.f32 %v243, %v251
      %v300 = vadd.f32 %v298, %v258
      %v301 = vadd.f32 %v299, %v259
      %v302 = vmin.f32 %v296, %v300
      %v303 = vmin.f32 %v297, %v301
      %v304 = vadd.f32 %v268, %v302
      %v305 = vadd.f32 %v269, %v303
      %306 = vst [vmem:[#allocation2] sm:$0xff] %v304
      %307 = vst [vmem:[#allocation2 + $0x8] sm:$0xff] %v305
      %v308 = vld [vmem:[#allocation2] sm:$0xff]
      %v309 = vld [vmem:[#allocation2 + $0x8] sm:$0xff]
      %v310 = vadd.f32 %v308, %v309
      %v311 = vrot.slane %v310, 4
      %v312 = vadd.f32 %v310, %v311
      %v313 = vrot.slane %v312, 2
      %v314 = vadd.f32 %v312, %v313
      %v315 = vrot.slane %v314, 1
      %v316 = vadd.f32 %v314, %v315
      %317 = vst [vmem:[%s211] sm:$0x1] %v316
      %p318 = scmp.lt.s32.totalorder %s17, 1
      %s319 = scalar_select %p318, %s17, 1
      %p320 = scmp.lt.s32.totalorder %s18, 0
      %s321 = scalar_select %p320, %s18, 0
      %s322 = sadd.s32 %s321, %s319
      %s323 = scalar_lea.vmem %s2, %s322
      // Predicated region
      $region29: #{permutation_invariant_loss.1} parent=27 // pred_check
        %p324 = pneg %p101
      $region30: #{permutation_invariant_loss.1} parent=27 // pred_check_branch
        %326 = sbr.rel (%p324) target = $region32
      $region31: #{permutation_invariant_loss.1} parent=27 // pred_region
        _
      $region32: #{permutation_invariant_loss.1} parent=27 // pred_fallthru
        _
    $region28: #{permutation_invariant_loss.1} parent=5 // pred_fallthru
      _
    %p327 = scmp.le.s32.totalorder 2, %s8
    // Predicated region
    $region33: #{permutation_invariant_loss.1} parent=5 // pred_check
      %p328 = pneg %p327
    $region34: #{permutation_invariant_loss.1} parent=5 // pred_check_branch
      %330 = sbr.rel (%p328) target = $region36
    $region35: #{permutation_invariant_loss.1} parent=5 // pred_region
      %s331 = ssub.s32 %s8, 2
      // Predicated region
      $region37: #{permutation_invariant_loss.1} parent=35 // pred_check
        %p332 = pneg %p107
      $region38: #{permutation_invariant_loss.1} parent=35 // pred_check_branch
        %334 = sbr.rel (%p332) target = $region40
      $region39: #{permutation_invariant_loss.1} parent=35 // pred_region
        %p335 = scmp.lt.s32.totalorder %s19, 1
        %s336 = scalar_select %p335, %s19, 1
        %p337 = scmp.lt.s32.totalorder %s20, 0
        %s338 = scalar_select %p337, %s20, 0
        %s339 = sadd.s32 %s338, %s336
        %s340 = scalar_lea.vmem %s2, %s339
      $region40: #{permutation_invariant_loss.1} parent=35 // pred_fallthru
        _
    $region36: #{permutation_invariant_loss.1} parent=5 // pred_fallthru
      _
  $region6: #{permutation_invariant_loss.1} parent=0 // loop_footer
    %s12 = sadd.s32 1, %s8
  $region7: #{permutation_invariant_loss.1} parent=0 // loop_footer_branch
    %7 = sbr.rel target = $region3
  $region8: #{permutation_invariant_loss.1} parent=0 // loop_exit
    _

</llo_original>
